<compile_context>
chip_gen: v5e
topology: v5e:2x2
jax: 0.10.0
libtpu: 0.0.40
codegen_flags: <defaults>
</compile_context>

<pallas_src>
import math

import jax
import jax.numpy as jnp
from jax.experimental import pallas as pl
from jax.experimental.pallas import tpu as pltpu


def _make_lift_kernel(f, kwargs):
    def kernel(x_ref, o_ref):
        o_ref[...] = f(x_ref[...], **kwargs).astype(o_ref.dtype)
    return kernel


def _sublane_pack(dtype):
    # Rows per packed sublane group: 8 for 32-bit, 16 for 16-bit, 32 for 8-bit.
    itemsize = jnp.dtype(dtype).itemsize
    if itemsize >= 4:
        return 8
    if itemsize == 2:
        return 16
    return 32


def _vmem_capacity_bytes():
    # Generation-aware VMEM capacity (128 MiB on v5e/v6e, 64 MiB per TC on v7x).
    try:
        info = pltpu.get_tpu_info()
        cap = getattr(info, "vmem_capacity_bytes", None)
        if cap:
            return int(cap)
    except Exception:
        pass
    return 64 << 20  # conservative default (v7x per-TC VMEM); safe everywhere


def lift(f, **kwargs):
    """Pallas equivalent of Lift(f, **kwargs): forward(x) == f(x, **kwargs).

    Assumes f is elementwise / shape-preserving so it can be applied
    independently to each VMEM tile (the common Lift use-case: activations,
    scale/shift, clamping, ...).
    """
    # TODO(synk): only shape-preserving *elementwise* f can be lifted tile-wise;
    # axis-wise ops (softmax, layernorm, cumsum, pooling, ...) would silently be
    # applied over the flattened tile axes and are not supported here.
    for k, v in kwargs.items():
        if hasattr(v, "ndim") and getattr(v, "ndim", 0) > 0:
            raise ValueError(
                f"lift(): kwarg {k!r} is a non-scalar array; only scalar / "
                "static kwargs are supported (an array kwarg would broadcast "
                "against the flattened tile, not the original layout).")

    kernel = _make_lift_kernel(f, kwargs)

    def forward(x):
        x = jnp.asarray(x)
        orig_shape = x.shape
        total = math.prod(orig_shape) if orig_shape else 1

        # Output dtype (and shape-preservation check) from abstract evaluation.
        out_sds = jax.eval_shape(lambda v: f(v, **kwargs),
                                 jax.ShapeDtypeStruct(x.shape, x.dtype))
        assert out_sds.shape == x.shape, (
            "lift(): only elementwise (shape-preserving) f is supported, "
            f"got {x.shape} -> {out_sds.shape}")
        out_dtype = out_sds.dtype

        if total == 0:
            return jnp.zeros(orig_shape, out_dtype)

        in_item = jnp.dtype(x.dtype).itemsize
        out_item = jnp.dtype(out_dtype).itemsize
        pack = max(_sublane_pack(x.dtype), _sublane_pack(out_dtype))

        # Generation-aware per-step byte budget (input + output bytes of one
        # grid step).  v5e/v6e (128 MiB VMEM) -> ~16 MiB steps; v7x (64 MiB)
        # -> ~8 MiB steps.  Double-buffered footprint stays at ~VMEM/4.
        vmem_cap = _vmem_capacity_bytes()
        step_budget = vmem_cap // 8

        # --------------------------------------------------------------
        # Pick a 2-D view (rows, L) of the flat data.  Every branch is a
        # reshape of a contiguous buffer => no extra HBM traffic (the old
        # jnp.pad + [:total] slice path cost up to two extra HBM passes).
        # --------------------------------------------------------------
        if total % 128 == 0:
            # Lane-dense: largest L in {2048,...,128} that divides total
            # (unmasked, full-width vector stores).
            L = 128
            for cand in (2048, 1024, 512, 256):
                if total % cand == 0:
                    L = cand
                    break
            rows = total // L
        else:
            C = orig_shape[-1] if x.ndim >= 2 else total
            if x.ndim >= 2 and C * (in_item + out_item) <= step_budget:
                # Ragged total: keep the original minor dim in lanes (block
                # lane dim == full array dim is always legal); tile rows only.
                L, rows = C, total // C
            else:
                # Ragged ~1-D (or huge minor dim): single logical row,
                # tiled along lanes below.
                L, rows = total, 1

        x2d = x.reshape(rows, L)
        bytes_per_row = L * (in_item + out_item)

        if rows == 1 and bytes_per_row > step_budget:
            # Rare path: one huge ragged row -> tile the lane dim in
            # 128-multiples; the partial tail block is masked by Pallas.
            tl = max(128, (step_budget // (in_item + out_item)) // 128 * 128)
            grid = (pl.cdiv(L, tl),)
            block = (1, tl)
            index_map = lambda i: (0, i)
        else:
            # Row tiling.  tm sized from in+out bytes (handles upcasting f).
            tm = max(pack, (step_budget // bytes_per_row) // pack * pack)
            # Keep >= ~4 grid steps for medium/large arrays so the grid can
            # shard across v7x's two TensorCores and the DMA pipeline overlaps.
            total_bytes = rows * bytes_per_row
            if rows >= 4 * pack and total_bytes >= (1 << 20):
                split_tm = max(pack, -(-pl.cdiv(rows, 4) // pack) * pack)
                tm = min(tm, split_tm)
            if tm >= rows:
                tm = rows  # full-dim block is always legal (even if not 8-aligned)
            grid = (pl.cdiv(rows, tm),)
            block = (tm, L)
            index_map = lambda i: (i, 0)

        cost = pl.CostEstimate(
            flops=total,
            transcendentals=0,
            bytes_accessed=total * (in_item + out_item),
        )

        out2d = pl.pallas_call(
            kernel,
            out_shape=jax.ShapeDtypeStruct((rows, L), out_dtype),
            grid_spec=pltpu.PrefetchScalarGridSpec(
                num_scalar_prefetch=0,
                grid=grid,
                in_specs=[pl.BlockSpec(block, index_map)],
                out_specs=pl.BlockSpec(block, index_map),
            ),
            compiler_params=pltpu.CompilerParams(
                dimension_semantics=("parallel",),            # megacore sharding
                vmem_limit_bytes=min(vmem_cap // 2, 128 << 20),
            ),
            cost_estimate=cost,
            # NOTE: input_output_aliases={0: 0} could additionally be set when
            # out_dtype == x.dtype AND the caller donates x (halves HBM
            # footprint); Lift cannot know donation, so it is left off.
        )(x2d)

        return out2d.reshape(orig_shape)

    return forward


if __name__ == "__main__":
    key = jax.random.PRNGKey(0)

    # Small deterministic example consistent with a conv-stack activation:
    # N=2, C=4, H=16, W=16.
    N, C, H, W = 2, 4, 16, 16
    x = jax.random.normal(key, (N, C, H, W), dtype=jnp.float32)

    # Lift an elementwise function with kwargs, mirroring e.g.
    # Lift(F.leaky_relu, negative_slope=0.1) in the PyTorch code.
    module = lift(jax.nn.leaky_relu, negative_slope=0.1)
    out = jax.block_until_ready(module(x))
    ref = jax.nn.leaky_relu(x, negative_slope=0.1)
    assert out.shape == x.shape and out.dtype == ref.dtype
    assert jnp.allclose(out, ref, atol=1e-6), "leaky_relu lift mismatch"

    # A second lifted function (scale-and-shift via kwargs) to show the
    # generic f(input, **kwargs) forward semantics.
    module2 = lift(lambda v, scale, shift: v * scale + shift, scale=2.0, shift=0.5)
    out2 = jax.block_until_ready(module2(x))
    ref2 = x * 2.0 + 0.5
    assert jnp.allclose(out2, ref2, atol=1e-6), "scale-shift lift mismatch"

    # Ragged total (300 elements, not a multiple of 128): exercises the
    # no-pad / no-slice ragged path.
    xr = jax.random.normal(jax.random.PRNGKey(1), (2, 3, 50), dtype=jnp.float32)
    out3 = jax.block_until_ready(module(xr))
    ref3 = jax.nn.leaky_relu(xr, negative_slope=0.1)
    assert out3.shape == xr.shape
    assert jnp.allclose(out3, ref3, atol=1e-6), "ragged lift mismatch"

    print("KERNEL_OK")
</pallas_src>

<mosaic_0001>
module attributes {stable_mosaic.version = 11 : i64} {
  func.func @kernel(%arg0: i32, %arg1: memref<1x2048xf32, #tpu.memory_space<vmem>>, %arg2: memref<1x2048xf32, #tpu.memory_space<vmem>>) attributes {dimension_semantics = [#tpu.dimension_semantics<parallel>], iteration_bounds = array<i64: 1>, scalar_prefetch = 0 : i64, scratch_operands = 0 : i64, tpu.core_type = #tpu.core_type<tc>, window_params = [{transform_indices = @transform_0, window_bounds = array<i64: 1, 2048>}, {transform_indices = @transform_1, window_bounds = array<i64: 1, 2048>}]} {
    %c0 = arith.constant 0 : index
    %c0_0 = arith.constant 0 : index
    %0 = vector.load %arg1[%c0, %c0_0] : memref<1x2048xf32, #tpu.memory_space<vmem>>, vector<1x2048xf32>
    %cst = arith.constant 1.000000e-01 : f32
    %cst_1 = arith.constant 0.000000e+00 : f32
    %1 = vector.broadcast %cst_1 : f32 to vector<1x2048xf32>
    %2 = arith.cmpf oge, %0, %1 : vector<1x2048xf32>
    %3 = vector.broadcast %cst : f32 to vector<1x2048xf32>
    %4 = arith.mulf %3, %0 : vector<1x2048xf32>
    %5 = arith.select %2, %0, %4 : vector<1x2048xi1>, vector<1x2048xf32>
    %c0_2 = arith.constant 0 : index
    %c0_3 = arith.constant 0 : index
    %6 = vector.load %arg2[%c0_2, %c0_3] : memref<1x2048xf32, #tpu.memory_space<vmem>>, vector<1x2048xf32>
    tpu.vector_store %arg2[%c0_2, %c0_3], %5 {strides = array<i32>} : memref<1x2048xf32, #tpu.memory_space<vmem>>, vector<1x2048xf32>,
    return
  }
  func.func @transform_0(%arg0: i32) -> (i32, i32) {
    %c0_i32 = arith.constant 0 : i32
    %c0_i32_0 = arith.constant 0 : i32
    return %arg0, %c0_i32 : i32, i32
  }
  func.func @transform_1(%arg0: i32) -> (i32, i32) {
    %c0_i32 = arith.constant 0 : i32
    %c0_i32_0 = arith.constant 0 : i32
    return %arg0, %c0_i32 : i32, i32
  }
}

</mosaic_0001>

<llo_original>
// kernel: tpu_custom_call.1
$region0: #{tpu_custom_call.1}
  #allocation0 [shape = 'u32[]', space=smem, size = 0x4, offset = 0x4, fixed_abs, tag = 'smem constant byte address 0x4 - core index']
  #allocation1 [shape = 'u32[72,128]{1,0:T(1,128)}', space=vmem, size = 0x9000, scoped, tag = 'internal scratch']
  %s0 = inlined_call_operand.hbm [shape: f32[1,2048], index: 0, kind: input, shape index: {}]
  %s1 = inlined_call_operand.hbm [shape: f32[1,2048], index: 1, kind: output, shape index: {}]
  %s2 = sld [smem:[#allocation0]]
  $region18: #{tpu_custom_call.1} parent=0
    _
  %s4 = ssub.s32 1, %s2
  %s5 = scalar_select 0, %s4, %s2
  $region1: #{tpu_custom_call.1} parent=0
    #allocation2 [shape = 'u8[8192]{0}', space=vmem, size = 0x2000, scoped, tag = 'input window, operand 0, single buffered']
    #allocation3 [shape = 's32[1]{0}', space=sflag, size = 0x4, scoped, tag = 'scoped memory for tpu_custom_call.1']
    #allocation4 [shape = 's32[1]{0}', space=sflag, size = 0x4, scoped, tag = 'scoped memory for tpu_custom_call.1']
    #allocation5 [shape = 'u8[8192]{0}', space=vmem, size = 0x2000, scoped, tag = 'output window, operand 0, single buffered']
    %6 = vsyncpa [#allocation3], 0
    %7 = vsyncpa [#allocation4], 0
    // Predicated region
    $region2: #{tpu_custom_call.1} parent=1 // pred_check
      _
    $region3: #{tpu_custom_call.1} parent=1 // pred_check_branch
      %9 = sbr.rel (0) target = $region5
    $region4: #{tpu_custom_call.1} parent=1 // pred_region
      %11 = vsyncadd [#allocation3], 0
      %s13 = sshll.u32 %s0, 4
      %s14 = int_to_ptr.hbm [resolvable:$true] %s13
      %s15 = sshll.u32 [#allocation2], 4
      %s16 = int_to_ptr.vmem [resolvable:$true] %s15
      %18 = dma.hbm_to_vmem [thread:$0]  %s14, 256, %s16, [#allocation3]
    $region5: #{tpu_custom_call.1} parent=1 // pred_fallthru
      _
    // Predicated region
    $region6: #{tpu_custom_call.1} parent=1 // pred_check
      _
    $region7: #{tpu_custom_call.1} parent=1 // pred_check_branch
      %20 = sbr.rel (0) target = $region9
    $region8: #{tpu_custom_call.1} parent=1 // pred_region
      %22 = dma.done [#allocation3], 256
    $region9: #{tpu_custom_call.1} parent=1 // pred_fallthru
      _
    %v23 = vld [vmem:[#allocation2] sm:$0xff]
    %v24 = vld [vmem:[#allocation2 + $0x8] sm:$0xff]
    %vm25 = vcmp.ge.f32.partialorder %v23, 0.0
    %vm26 = vcmp.ge.f32.partialorder %v24, 0.0
    %v27 = vmul.f32 %v23, 0.1
    %v28 = vmul.f32 %v24, 0.1
    %v29 = vsel %vm25, %v23, %v27
    %v30 = vsel %vm26, %v24, %v28
    %31 = vst [vmem:[#allocation5] sm:$0xff] %v29
    %32 = vst [vmem:[#allocation5 + $0x8] sm:$0xff] %v30
    // Predicated region
    $region10: #{tpu_custom_call.1} parent=1 // pred_check
      _
    $region11: #{tpu_custom_call.1} parent=1 // pred_check_branch
      %34 = sbr.rel (0) target = $region13
    $region12: #{tpu_custom_call.1} parent=1 // pred_region
      %36 = vsyncadd [#allocation4], 0
      %s38 = sshll.u32 [#allocation5], 4
      %s39 = int_to_ptr.vmem [resolvable:$true] %s38
      %s40 = sshll.u32 %s1, 4
      %s41 = int_to_ptr.hbm [resolvable:$true] %s40
      %43 = dma.vmem_to_hbm [thread:$0]  %s39, 256, %s41, [#allocation4]
    $region13: #{tpu_custom_call.1} parent=1 // pred_fallthru
      _
    // Predicated region
    $region14: #{tpu_custom_call.1} parent=1 // pred_check
      _
    $region15: #{tpu_custom_call.1} parent=1 // pred_check_branch
      %45 = sbr.rel (0) target = $region17
    $region16: #{tpu_custom_call.1} parent=1 // pred_region
      %47 = dma.done [#allocation4], 256
    $region17: #{tpu_custom_call.1} parent=1 // pred_fallthru
      _
    %48 = vsyncpa [#allocation3], 1
    %49 = vsyncpa [#allocation4], 1

</llo_original>
